<compile_context>
chip_gen: v6e
topology: v6e:2x2x1
jax: 0.10.0
libtpu: 0.0.40
codegen_flags: <defaults>
</compile_context>

<pallas_src>
import functools

import jax
import jax.numpy as jnp
from jax.experimental import pallas as pl
from jax.experimental.pallas import tpu as pltpu


HIDDEN = 32
LANE_CHUNK = 512  # max lanes per inner compute chunk (bounds vreg pressure)


def _pick_chunk(tb):
    """Largest multiple of 128 that divides tb and is <= LANE_CHUNK."""
    for cand in (512, 384, 256, 128):
        if cand <= LANE_CHUNK and tb % cand == 0:
            return cand
    return tb


def denoiser_kernel(xt_ref, p_ref, w23_ref, o_ref):
    tb = o_ref.shape[-1]                  # static (Python int) at trace time
    chunk = _pick_chunk(tb)
    n_chunks = tb // chunk

    # Resident packed parameters, hoisted out of the lane-chunk loop.
    p = p_ref[...]                        # (32, 8) f32
    w1x = p[:, 0:1]                       # (32, 1)
    w1t = p[:, 1:2]
    b1 = p[:, 2:3]
    b2 = p[:, 3:4]
    b3 = p[:, 4:5]
    w4t = p[:, 5:6]                       # column of the last Linear's weight
    b4 = p[0:1, 6:7]                      # (1, 1)
    w2 = w23_ref[0]                       # (32, 32) bf16 (MXU operand)
    w3 = w23_ref[1]                       # (32, 32) bf16

    # Strip-mine the lane (batch) axis: keeps each intermediate at
    # (32, chunk) instead of (32, tb), so large batch tiles don't spill.
    for c in range(n_chunks):             # static trip count -> unrolled
        lo, hi = c * chunk, (c + 1) * chunk
        x = xt_ref[0:1, lo:hi]            # (1, chunk) f32
        t = xt_ref[1:2, lo:hi]            # (1, chunk) f32

        # Layer 1: cat([x, t]) @ W1.T + b1  ==  W1[:,0]*x + W1[:,1]*t + b1
        # (VPU sublane broadcasts; kept f32 -- v5e has no bf16 VPU).
        h = w1x * x + w1t * t + b1        # (32, chunk) f32
        h = jnp.maximum(h, 0.0)

        # Layers 2/3: bf16 MXU matmuls, f32 accumulation, f32 bias + ReLU.
        h = jnp.dot(w2, h.astype(jnp.bfloat16),
                    preferred_element_type=jnp.float32) + b2
        h = jnp.maximum(h, 0.0)
        h = jnp.dot(w3, h.astype(jnp.bfloat16),
                    preferred_element_type=jnp.float32) + b3
        h = jnp.maximum(h, 0.0)

        # Layer 4: Linear(32, 1) as VPU multiply + sublane (XLU) reduction.
        out = jnp.sum(h * w4t, axis=0, keepdims=True) + b4   # (1, chunk) f32
        o_ref[0:1, lo:hi] = out.astype(o_ref.dtype)


def init_params(key, dim_in=2):
    """Deterministic synthetic parameters (PyTorch nn.Linear init, (out,in) layout)."""
    ks = jax.random.split(key, 8)

    def lin(kw, kb, fan_in, fan_out):
        bound = 1.0 / jnp.sqrt(fan_in)
        w = jax.random.uniform(kw, (fan_out, fan_in), jnp.float32, -bound, bound)
        b = jax.random.uniform(kb, (fan_out,), jnp.float32, -bound, bound)
        return w, b

    w1, b1 = lin(ks[0], ks[1], dim_in, HIDDEN)   # (32, 2), (32,)
    w2, b2 = lin(ks[2], ks[3], HIDDEN, HIDDEN)   # (32, 32), (32,)
    w3, b3 = lin(ks[4], ks[5], HIDDEN, HIDDEN)   # (32, 32), (32,)
    w4, b4 = lin(ks[6], ks[7], HIDDEN, 1)        # (1, 32), (1,)
    return (w1, b1, w2, b2, w3, b3, w4, b4)


def _pack_params(params):
    """Pack the 8 small tensors into two resident slabs for the kernel."""
    w1, b1, w2, b2, w3, b3, w4, b4 = params
    p = jnp.zeros((HIDDEN, 8), jnp.float32)
    p = p.at[:, 0].set(w1[:, 0])
    p = p.at[:, 1].set(w1[:, 1])
    p = p.at[:, 2].set(b1)
    p = p.at[:, 3].set(b2)
    p = p.at[:, 4].set(b3)
    p = p.at[:, 5].set(w4[0, :])
    p = p.at[:, 6].set(jnp.full((HIDDEN,), b4[0], jnp.float32))
    w23 = jnp.stack([w2, w3], axis=0).astype(jnp.bfloat16)   # (2, 32, 32)
    return p, w23


@functools.partial(jax.jit, static_argnames=("tb",))
def denoiser_forward(x, t, params, tb=2048):
    """x: (B, 1) f32, t: (B,) f32 -> (B, 1) f32."""
    b = x.shape[0]

    # Lane tile: multiple of 128, large enough to amortize per-step overhead,
    # capped so tiny batches aren't over-padded and v7x gets >= 2 tiles.
    b128 = int(pl.cdiv(b, 128)) * 128
    tb_eff = min(int(tb), b128)
    if b128 >= 256:
        tb_eff = min(tb_eff, max(128, (b128 // 2 // 128) * 128))
    tb_eff = max(128, (tb_eff // 128) * 128)
    b_pad = int(pl.cdiv(b, tb_eff)) * tb_eff
    n_tiles = b_pad // tb_eff

    # One lane-dense (2, B_pad) slab holds both batch-varying operands.
    # TODO(synk): accept a (2, B) row layout from the caller to avoid this
    # extra XLA pad/stack pass over HBM (minor; kernel I/O is 12 B/sample).
    xt = jnp.stack([x[:, 0].astype(jnp.float32), t.astype(jnp.float32)], axis=0)
    xt = jnp.pad(xt, ((0, 0), (0, b_pad - b)))

    p, w23 = _pack_params(params)

    batch_in_spec = pl.BlockSpec((2, tb_eff), lambda i: (0, i))
    out_spec = pl.BlockSpec((1, tb_eff), lambda i: (0, i))
    resident = lambda shape: pl.BlockSpec(shape, lambda i: (0,) * len(shape))

    out_row = pl.pallas_call(
        denoiser_kernel,
        out_shape=jax.ShapeDtypeStruct((1, b_pad), jnp.float32),
        grid=(n_tiles,),
        in_specs=[batch_in_spec, resident(p.shape), resident(w23.shape)],
        out_specs=out_spec,
        compiler_params=pltpu.CompilerParams(
            dimension_semantics=("parallel",)),
        cost_estimate=pl.CostEstimate(
            flops=4288 * b_pad,            # ~2*(2*32 + 32*32 + 32*32 + 32)/sample
            transcendentals=0,
            bytes_accessed=12 * b_pad + p.size * 4 + w23.size * 2),
    )(xt, p, w23)

    return out_row[0, :b][:, None]


def denoiser_ref(x, t, params, matmul_dtype=jnp.float32):
    """Pure-JAX reference matching the PyTorch module semantics.

    matmul_dtype=jnp.bfloat16 mirrors the kernel's MXU operand precision.
    """
    w1, b1, w2, b2, w3, b3, w4, b4 = params
    h = jnp.concatenate([x, t[:, None]], axis=-1)              # (B, 2)
    h = jnp.maximum(h @ w1.T + b1, 0.0)                        # (B, 32)
    h = jnp.maximum(
        jnp.dot(h.astype(matmul_dtype), w2.astype(matmul_dtype).T,
                preferred_element_type=jnp.float32) + b2, 0.0)
    h = jnp.maximum(
        jnp.dot(h.astype(matmul_dtype), w3.astype(matmul_dtype).T,
                preferred_element_type=jnp.float32) + b3, 0.0)
    return h @ w4.T + b4                                       # (B, 1)


if __name__ == "__main__":
    key = jax.random.PRNGKey(0)
    kx, kt, kp = jax.random.split(key, 3)

    B = 8
    x = jax.random.normal(kx, (B, 1), jnp.float32)
    t = jax.random.uniform(kt, (B,), jnp.float32)
    params = init_params(kp, dim_in=2)

    out = denoiser_forward(x, t, params)
    out = jax.block_until_ready(out)
    assert out.shape == (B, 1)

    # Tight check vs. a reference using the same bf16 MXU operand precision.
    ref_bf16 = denoiser_ref(x, t, params, matmul_dtype=jnp.bfloat16)
    assert jnp.allclose(out, ref_bf16, atol=1e-3, rtol=1e-3), (out, ref_bf16)

    # Loose check vs. the full-f32 PyTorch-semantics reference.
    ref_f32 = denoiser_ref(x, t, params)
    assert jnp.allclose(out, ref_f32, atol=3e-2, rtol=3e-2), (out, ref_f32)

    print("KERNEL_OK")
</pallas_src>

<mosaic_0001>
module attributes {stable_mosaic.version = 11 : i64} {
  func.func @denoiser_kernel(%arg0: i32, %arg1: memref<2x128xf32, #tpu.memory_space<vmem>>, %arg2: memref<32x8xf32, #tpu.memory_space<vmem>>, %arg3: memref<2x32x32xbf16, #tpu.memory_space<vmem>>, %arg4: memref<1x128xf32, #tpu.memory_space<vmem>>) attributes {dimension_semantics = [#tpu.dimension_semantics<parallel>], iteration_bounds = array<i64: 1>, scalar_prefetch = 0 : i64, scratch_operands = 0 : i64, tpu.core_type = #tpu.core_type<tc>, window_params = [{transform_indices = @transform_0, window_bounds = array<i64: 2, 128>}, {pipeline_mode = #tpu.pipeline_mode<synchronous>, transform_indices = @transform_1, window_bounds = array<i64: 32, 8>}, {pipeline_mode = #tpu.pipeline_mode<synchronous>, transform_indices = @transform_2, window_bounds = array<i64: 2, 32, 32>}, {transform_indices = @transform_3, window_bounds = array<i64: 1, 128>}]} {
    %c0 = arith.constant 0 : index
    %c0_0 = arith.constant 0 : index
    %0 = vector.load %arg2[%c0, %c0_0] : memref<32x8xf32, #tpu.memory_space<vmem>>, vector<32x8xf32>
    %1 = vector.extract_strided_slice %0 {offsets = [0, 0], sizes = [32, 1], strides = [1, 1]} : vector<32x8xf32> to vector<32x1xf32>
    %2 = vector.extract_strided_slice %0 {offsets = [0, 1], sizes = [32, 1], strides = [1, 1]} : vector<32x8xf32> to vector<32x1xf32>
    %3 = vector.extract_strided_slice %0 {offsets = [0, 2], sizes = [32, 1], strides = [1, 1]} : vector<32x8xf32> to vector<32x1xf32>
    %4 = vector.extract_strided_slice %0 {offsets = [0, 3], sizes = [32, 1], strides = [1, 1]} : vector<32x8xf32> to vector<32x1xf32>
    %5 = vector.extract_strided_slice %0 {offsets = [0, 4], sizes = [32, 1], strides = [1, 1]} : vector<32x8xf32> to vector<32x1xf32>
    %6 = vector.extract_strided_slice %0 {offsets = [0, 5], sizes = [32, 1], strides = [1, 1]} : vector<32x8xf32> to vector<32x1xf32>
    %7 = vector.extract_strided_slice %0 {offsets = [0, 6], sizes = [1, 1], strides = [1, 1]} : vector<32x8xf32> to vector<1x1xf32>
    %c0_1 = arith.constant 0 : index
    %c0_2 = arith.constant 0 : index
    %c0_3 = arith.constant 0 : index
    %8 = vector.load %arg3[%c0_1, %c0_2, %c0_3] : memref<2x32x32xbf16, #tpu.memory_space<vmem>>, vector<1x32x32xbf16>
    %9 = vector.shape_cast %8 : vector<1x32x32xbf16> to vector<32x32xbf16>
    %c1 = arith.constant 1 : index
    %c0_4 = arith.constant 0 : index
    %c0_5 = arith.constant 0 : index
    %10 = vector.load %arg3[%c1, %c0_4, %c0_5] : memref<2x32x32xbf16, #tpu.memory_space<vmem>>, vector<1x32x32xbf16>
    %11 = vector.shape_cast %10 : vector<1x32x32xbf16> to vector<32x32xbf16>
    %c0_6 = arith.constant 0 : index
    %c0_7 = arith.constant 0 : index
    %12 = vector.load %arg1[%c0_6, %c0_7] : memref<2x128xf32, #tpu.memory_space<vmem>>, vector<1x128xf32>
    %c1_8 = arith.constant 1 : index
    %c0_9 = arith.constant 0 : index
    %13 = vector.load %arg1[%c1_8, %c0_9] : memref<2x128xf32, #tpu.memory_space<vmem>>, vector<1x128xf32>
    %14 = vector.broadcast %1 : vector<32x1xf32> to vector<32x128xf32>
    %15 = vector.broadcast %12 : vector<1x128xf32> to vector<32x128xf32>
    %16 = arith.mulf %14, %15 : vector<32x128xf32>
    %17 = vector.broadcast %2 : vector<32x1xf32> to vector<32x128xf32>
    %18 = vector.broadcast %13 : vector<1x128xf32> to vector<32x128xf32>
    %19 = arith.mulf %17, %18 : vector<32x128xf32>
    %20 = arith.addf %16, %19 : vector<32x128xf32>
    %21 = vector.broadcast %3 : vector<32x1xf32> to vector<32x128xf32>
    %22 = arith.addf %20, %21 : vector<32x128xf32>
    %cst = arith.constant 0.000000e+00 : f32
    %23 = vector.broadcast %cst : f32 to vector<32x128xf32>
    %24 = arith.maximumf %22, %23 : vector<32x128xf32>
    %25 = arith.truncf %24 : vector<32x128xf32> to vector<32x128xbf16>
    %cst_10 = arith.constant dense<0.000000e+00> : vector<32x128xf32>
    %26 = tpu.matmul %9, %25, %cst_10 {dimension_numbers = #tpu.dot_dimension_numbers<[1], [0], [0], [1], [0, 0, 1, 1], [], []>} : vector<32x32xbf16>, vector<32x128xbf16>, vector<32x128xf32> -> vector<32x128xf32>
    %27 = vector.broadcast %4 : vector<32x1xf32> to vector<32x128xf32>
    %28 = arith.addf %26, %27 : vector<32x128xf32>
    %cst_11 = arith.constant 0.000000e+00 : f32
    %29 = vector.broadcast %cst_11 : f32 to vector<32x128xf32>
    %30 = arith.maximumf %28, %29 : vector<32x128xf32>
    %31 = arith.truncf %30 : vector<32x128xf32> to vector<32x128xbf16>
    %cst_12 = arith.constant dense<0.000000e+00> : vector<32x128xf32>
    %32 = tpu.matmul %11, %31, %cst_12 {dimension_numbers = #tpu.dot_dimension_numbers<[1], [0], [0], [1], [0, 0, 1, 1], [], []>} : vector<32x32xbf16>, vector<32x128xbf16>, vector<32x128xf32> -> vector<32x128xf32>
    %33 = vector.broadcast %5 : vector<32x1xf32> to vector<32x128xf32>
    %34 = arith.addf %32, %33 : vector<32x128xf32>
    %cst_13 = arith.constant 0.000000e+00 : f32
    %35 = vector.broadcast %cst_13 : f32 to vector<32x128xf32>
    %36 = arith.maximumf %34, %35 : vector<32x128xf32>
    %37 = vector.broadcast %6 : vector<32x1xf32> to vector<32x128xf32>
    %38 = arith.mulf %36, %37 : vector<32x128xf32>
    %cst_14 = arith.constant dense<0.000000e+00> : vector<128xf32>
    %39 = vector.multi_reduction <add>, %38, %cst_14 [0] : vector<32x128xf32> to vector<128xf32>
    %40 = vector.shape_cast %39 : vector<128xf32> to vector<1x128xf32>
    %41 = vector.broadcast %7 : vector<1x1xf32> to vector<1x128xf32>
    %42 = arith.addf %40, %41 : vector<1x128xf32>
    %c0_15 = arith.constant 0 : index
    %c0_16 = arith.constant 0 : index
    %43 = vector.load %arg4[%c0_15, %c0_16] : memref<1x128xf32, #tpu.memory_space<vmem>>, vector<1x128xf32>
    tpu.vector_store %arg4[%c0_15, %c0_16], %42 {strides = array<i32>} : memref<1x128xf32, #tpu.memory_space<vmem>>, vector<1x128xf32>,
    return
  }
  func.func @transform_0(%arg0: i32) -> (i32, i32) {
    %c0_i32 = arith.constant 0 : i32
    %c0_i32_0 = arith.constant 0 : i32
    return %c0_i32, %arg0 : i32, i32
  }
  func.func @transform_1(%arg0: i32) -> (i32, i32) {
    %c0_i32 = arith.constant 0 : i32
    %c0_i32_0 = arith.constant 0 : i32
    %c0_i32_1 = arith.constant 0 : i32
    return %c0_i32, %c0_i32_0 : i32, i32
  }
  func.func @transform_2(%arg0: i32) -> (i32, i32, i32) {
    %c0_i32 = arith.constant 0 : i32
    %c0_i32_0 = arith.constant 0 : i32
    %c0_i32_1 = arith.constant 0 : i32
    %c0_i32_2 = arith.constant 0 : i32
    return %c0_i32, %c0_i32_0, %c0_i32_1 : i32, i32, i32
  }
  func.func @transform_3(%arg0: i32) -> (i32, i32) {
    %c0_i32 = arith.constant 0 : i32
    %c0_i32_0 = arith.constant 0 : i32
    return %c0_i32, %arg0 : i32, i32
  }
}

</mosaic_0001>

<llo_original>
// kernel: denoiser_forward.1
$region0: #{denoiser_forward.1}
  #allocation0 [shape = 'u32[]', space=smem, size = 0x4, offset = 0x4, fixed_abs, tag = 'smem constant byte address 0x4 - core index']
  #allocation1 [shape = 'u32[144,128]{1,0:T(1,128)}', space=vmem, size = 0x12000, scoped, tag = 'internal scratch']
  %s0 = inlined_call_operand.vmem [shape: f32[2,128], index: 0, kind: input, shape index: {}]
  %s1 = inlined_call_operand.vmem [shape: f32[32,8], index: 1, kind: input, shape index: {}]
  %s2 = inlined_call_operand.vmem [shape: bf16[2,32,32], index: 2, kind: input, shape index: {}]
  %s3 = inlined_call_operand.vmem [shape: f32[1,128], index: 3, kind: output, shape index: {}]
  %s4 = sld [smem:[#allocation0]]
  $region22: #{denoiser_forward.1} parent=0
    _
  %s6 = ssub.s32 1, %s4
  %s7 = scalar_select 0, %s6, %s4
  // Predicated region
  $region2: #{denoiser_forward.1} parent=0 // pred_check
    _
  $region3: #{denoiser_forward.1} parent=0 // pred_check_branch
    %9 = sbr.rel (0) target = $region5
  $region4: #{denoiser_forward.1} parent=0 // pred_region
    _
  $region5: #{denoiser_forward.1} parent=0 // pred_fallthru
    _
  // Predicated region
  $region6: #{denoiser_forward.1} parent=0 // pred_check
    _
  $region7: #{denoiser_forward.1} parent=0 // pred_check_branch
    %11 = sbr.rel (0) target = $region9
  $region8: #{denoiser_forward.1} parent=0 // pred_region
    _
  $region9: #{denoiser_forward.1} parent=0 // pred_fallthru
    _
  // Predicated region
  $region10: #{denoiser_forward.1} parent=0 // pred_check
    _
  $region11: #{denoiser_forward.1} parent=0 // pred_check_branch
    %13 = sbr.rel (0) target = $region13
  $region12: #{denoiser_forward.1} parent=0 // pred_region
    _
  $region13: #{denoiser_forward.1} parent=0 // pred_fallthru
    _
  %v15 = vld [vmem:[%s1] sm:$0xff]
  %v16 = vld [vmem:[%s1 + $0x8] sm:$0xff]
  %v17 = vld [vmem:[%s1 + $0x10] sm:$0xff]
  %v18 = vld [vmem:[%s1 + $0x18] sm:$0xff]
  %v19 = vld [vmem:[%s2] sm:$0xf]
  %v20 = vld [vmem:[%s2 + $0x4] sm:$0xf]
  %v21 = vld [vmem:[%s2 + $0x8] sm:$0xf]
  %v22 = vld [vmem:[%s2 + $0xc] sm:$0xf]
  %s23 = scalar_lea.vmem %s2, 16
  %v24 = vld [vmem:[%s23] sm:$0xf]
  %v25 = vld [vmem:[%s23 + $0x4] sm:$0xf]
  %v26 = vld [vmem:[%s23 + $0x8] sm:$0xf]
  %v27 = vld [vmem:[%s23 + $0xc] sm:$0xf]
  %v28 = vld [vmem:[%s0] sm:$0x1]
  %v29 = vld [vmem:[%s0 + $0x1] sm:$0x1]
  %31 = vset.pattern.permute.xlu0 0
  %32 = vperm.xlu0 %31, %v15
  %v33 = vpop.permute.xlu0 %32
  %36 = vset.pattern.permute.xlu0 0
  %37 = vperm.xlu0 %36, %v16
  %v38 = vpop.permute.xlu0 %37
  %41 = vset.pattern.permute.xlu0 0
  %42 = vperm.xlu0 %41, %v17
  %v43 = vpop.permute.xlu0 %42
  %46 = vset.pattern.permute.xlu0 0
  %47 = vperm.xlu0 %46, %v18
  %v48 = vpop.permute.xlu0 %47
  %v50 = vlaneseq
  %v51 = vshrl.u32 %v50, 7
  %v52 = vsub.s32 0, %v51
  %v53 = vrot.slane %v28, %v52
  %v54 = vmul.f32 %v33, %v53
  %v55 = vmul.f32 %v38, %v53
  %v56 = vmul.f32 %v43, %v53
  %v57 = vmul.f32 %v48, %v53
  %58 = vset.pattern.permute.xlu0 1
  %59 = vperm.xlu0 %58, %v15
  %v60 = vpop.permute.xlu0 %59
  %62 = vset.pattern.permute.xlu0 1
  %63 = vperm.xlu0 %62, %v16
  %v64 = vpop.permute.xlu0 %63
  %66 = vset.pattern.permute.xlu0 1
  %67 = vperm.xlu0 %66, %v17
  %v68 = vpop.permute.xlu0 %67
  %70 = vset.pattern.permute.xlu0 1
  %71 = vperm.xlu0 %70, %v18
  %v72 = vpop.permute.xlu0 %71
  %v74 = vlaneseq
  %v75 = vshrl.u32 %v74, 7
  %v76 = vsub.s32 0, %v75
  %v77 = vrot.slane %v29, %v76
  %v78 = vmul.f32 %v60, %v77
  %v79 = vmul.f32 %v64, %v77
  %v80 = vmul.f32 %v68, %v77
  %v81 = vmul.f32 %v72, %v77
  %v82 = vadd.f32 %v54, %v78
  %v83 = vadd.f32 %v55, %v79
  %v84 = vadd.f32 %v56, %v80
  %v85 = vadd.f32 %v57, %v81
  %86 = vset.pattern.permute.xlu0 2
  %87 = vperm.xlu0 %86, %v15
  %v88 = vpop.permute.xlu0 %87
  %90 = vset.pattern.permute.xlu0 2
  %91 = vperm.xlu0 %90, %v16
  %v92 = vpop.permute.xlu0 %91
  %94 = vset.pattern.permute.xlu0 2
  %95 = vperm.xlu0 %94, %v17
  %v96 = vpop.permute.xlu0 %95
  %98 = vset.pattern.permute.xlu0 2
  %99 = vperm.xlu0 %98, %v18
  %v100 = vpop.permute.xlu0 %99
  %v102 = vadd.f32 %v82, %v88
  %v103 = vadd.f32 %v83, %v92
  %v104 = vadd.f32 %v84, %v96
  %v105 = vadd.f32 %v85, %v100
  %v106 = vmax.f32 %v102, 0.0
  %v107 = vmax.f32 %v103, 0.0
  %v108 = vmax.f32 %v104, 0.0
  %v109 = vmax.f32 %v105, 0.0
  %v110 = vpack.c.bf16 %v107, %v106
  %v111 = vpack.c.bf16 %v109, %v108
  %112 = vset.pattern.permute.xlu0 3
  %113 = vperm.xlu0 %112, %v15
  %v114 = vpop.permute.xlu0 %113
  %116 = vset.pattern.permute.xlu0 3
  %117 = vperm.xlu0 %116, %v16
  %v118 = vpop.permute.xlu0 %117
  %120 = vset.pattern.permute.xlu0 3
  %121 = vperm.xlu0 %120, %v17
  %v122 = vpop.permute.xlu0 %121
  %124 = vset.pattern.permute.xlu0 3
  %125 = vperm.xlu0 %124, %v18
  %v126 = vpop.permute.xlu0 %125
  %v132 = vunpack.c.l.b16 %v19
  %v133 = vunpack.c.l.b16 %v20
  %v134 = vunpack.c.l.b16 %v21
  %v135 = vunpack.c.l.b16 %v22
  %v136 = vpack.c.b16 %v133, %v132
  %v137 = vpack.c.b16 %v135, %v134
  %vm138 = vcmask 261120
  %v140 = vsel %vm138, %v136, 0
  %v143 = vsel %vm138, %v137, 0
  %145 = vmatprep.subr.bf16.mxu0 0
  %146 = vmatpush1.bf16.msra.mxu0 0
  %147 = vmatprep.subr.bf16.mxu0 0
  %148 = vmatpush1.bf16.msra.mxu0 0
  %149 = vmatprep.subr.bf16.mxu0 0
  %150 = vmatpush1.bf16.msra.mxu0 0
  %151 = vmatprep.subr.bf16.mxu0 0
  %152 = vmatpush1.bf16.msra.mxu0 0
  %153 = vmatprep.subr.bf16.mxu0 0
  %154 = vmatpush1.bf16.msra.mxu0 0
  %155 = vmatprep.subr.bf16.mxu0 0
  %156 = vmatpush1.bf16.msra.mxu0 0
  %157 = vmatprep.subr.bf16.mxu0 0
  %158 = vmatpush1.bf16.msra.mxu0 %v111
  %159 = vmatprep.subr.bf16.mxu0 0
  %160 = vmatpush1.bf16.msra.mxu0 %v110
  %161 = vmatprep.subr.bf16.mxu0 0
  %162 = vmatpush2.bf16.msra.mxu0 0
  %163 = vmatprep.subr.bf16.mxu0 0
  %164 = vmatpush2.bf16.msra.mxu0 0
  %165 = vmatprep.subr.bf16.mxu0 0
  %166 = vmatpush2.bf16.msra.mxu0 0
  %167 = vmatprep.subr.bf16.mxu0 0
  %168 = vmatpush2.bf16.msra.mxu0 0
  %169 = vmatprep.subr.bf16.mxu0 0
  %170 = vmatpush2.bf16.msra.mxu0 0
  %171 = vmatprep.subr.bf16.mxu0 0
  %172 = vmatpush2.bf16.msra.mxu0 0
  %173 = vmatprep.subr.bf16.mxu0 0
  %174 = vmatpush2.bf16.msra.mxu0 0
  %175 = vmatprep.subr.bf16.mxu0 0
  %176 = vmatpush2.bf16.msra.mxu0 0
  %177 = vmatprep.mubr.bf16.mxu0 0
  %178 = vmatmul.mubr.bf16.gmra.mxu0 %v140
  %v179 = vpop.f32.mrf.mxu0
  %v180 = vadd.f32 %v114, %v179
  %v181 = vpop.f32.mrf.mxu0
  %v182 = vpop.f32.mrf.mxu0
  %v183 = vadd.f32 %v118, %v182
  %v184 = vpop.f32.mrf.mxu0
  %185 = vmatprep.mubr.bf16.mxu0 0
  %186 = vmatmul.mubr.bf16.gmra.mxu0 %v143
  %v187 = vpop.f32.mrf.mxu0
  %v188 = vadd.f32 %v122, %v187
  %v189 = vpop.f32.mrf.mxu0
  %v190 = vpop.f32.mrf.mxu0
  %v191 = vadd.f32 %v126, %v190
  %v192 = vpop.f32.mrf.mxu0
  %193 = vdwg.mxu0
  %v194 = vmax.f32 %v180, 0.0
  %v195 = vmax.f32 %v183, 0.0
  %v196 = vmax.f32 %v188, 0.0
  %v197 = vmax.f32 %v191, 0.0
  %v198 = vpack.c.bf16 %v195, %v194
  %v199 = vpack.c.bf16 %v197, %v196
  %200 = vset.pattern.permute.xlu0 4
  %201 = vperm.xlu0 %200, %v15
  %v202 = vpop.permute.xlu0 %201
  %204 = vset.pattern.permute.xlu0 4
  %205 = vperm.xlu0 %204, %v16
  %v206 = vpop.permute.xlu0 %205
  %208 = vset.pattern.permute.xlu0 4
  %209 = vperm.xlu0 %208, %v17
  %v210 = vpop.permute.xlu0 %209
  %212 = vset.pattern.permute.xlu0 4
  %213 = vperm.xlu0 %212, %v18
  %v214 = vpop.permute.xlu0 %213
  %v220 = vunpack.c.l.b16 %v24
  %v221 = vunpack.c.l.b16 %v25
  %v222 = vunpack.c.l.b16 %v26
  %v223 = vunpack.c.l.b16 %v27
  %v224 = vpack.c.b16 %v221, %v220
  %v225 = vpack.c.b16 %v223, %v222
  %v227 = vsel %vm138, %v224, 0
  %v230 = vsel %vm138, %v225, 0
  %232 = vmatprep.subr.bf16.mxu0 0
  %233 = vmatpush1.bf16.msra.mxu0 0
  %234 = vmatprep.subr.bf16.mxu0 0
  %235 = vmatpush1.bf16.msra.mxu0 0
  %236 = vmatprep.subr.bf16.mxu0 0
  %237 = vmatpush1.bf16.msra.mxu0 0
  %238 = vmatprep.subr.bf16.mxu0 0
  %239 = vmatpush1.bf16.msra.mxu0 0
  %240 = vmatprep.subr.bf16.mxu0 0
  %241 = vmatpush1.bf16.msra.mxu0 0
  %242 = vmatprep.subr.bf16.mxu0 0
  %243 = vmatpush1.bf16.msra.mxu0 0
  %244 = vmatprep.subr.bf16.mxu0 0
  %245 = vmatpush1.bf16.msra.mxu0 %v199
  %246 = vmatprep.subr.bf16.mxu0 0
  %247 = vmatpush1.bf16.msra.mxu0 %v198
  %248 = vmatprep.subr.bf16.mxu0 0
  %249 = vmatpush2.bf16.msra.mxu0 0
  %250 = vmatprep.subr.bf16.mxu0 0
  %251 = vmatpush2.bf16.msra.mxu0 0
  %252 = vmatprep.subr.bf16.mxu0 0
  %253 = vmatpush2.bf16.msra.mxu0 0
  %254 = vmatprep.subr.bf16.mxu0 0
  %255 = vmatpush2.bf16.msra.mxu0 0
  %256 = vmatprep.subr.bf16.mxu0 0
  %257 = vmatpush2.bf16.msra.mxu0 0
  %258 = vmatprep.subr.bf16.mxu0 0
  %259 = vmatpush2.bf16.msra.mxu0 0
  %260 = vmatprep.subr.bf16.mxu0 0
  %261 = vmatpush2.bf16.msra.mxu0 0
  %262 = vmatprep.subr.bf16.mxu0 0
  %263 = vmatpush2.bf16.msra.mxu0 0
  %264 = vmatprep.mubr.bf16.mxu0 0
  %265 = vmatmul.mubr.bf16.gmra.mxu0 %v227
  %v266 = vpop.f32.mrf.mxu0
  %v267 = vadd.f32 %v202, %v266
  %v268 = vpop.f32.mrf.mxu0
  %v269 = vpop.f32.mrf.mxu0
  %v270 = vadd.f32 %v206, %v269
  %v271 = vpop.f32.mrf.mxu0
  %272 = vmatprep.mubr.bf16.mxu0 0
  %273 = vmatmul.mubr.bf16.gmra.mxu0 %v230
  %v274 = vpop.f32.mrf.mxu0
  %v275 = vadd.f32 %v210, %v274
  %v276 = vpop.f32.mrf.mxu0
  %v277 = vpop.f32.mrf.mxu0
  %v278 = vadd.f32 %v214, %v277
  %v279 = vpop.f32.mrf.mxu0
  %280 = vdwg.mxu0
  %v281 = vmax.f32 %v267, 0.0
  %v282 = vmax.f32 %v270, 0.0
  %v283 = vmax.f32 %v275, 0.0
  %v284 = vmax.f32 %v278, 0.0
  %285 = vset.pattern.permute.xlu0 5
  %286 = vperm.xlu0 %285, %v15
  %v287 = vpop.permute.xlu0 %286
  %289 = vset.pattern.permute.xlu0 5
  %290 = vperm.xlu0 %289, %v16
  %v291 = vpop.permute.xlu0 %290
  %293 = vset.pattern.permute.xlu0 5
  %294 = vperm.xlu0 %293, %v17
  %v295 = vpop.permute.xlu0 %294
  %297 = vset.pattern.permute.xlu0 5
  %298 = vperm.xlu0 %297, %v18
  %v299 = vpop.permute.xlu0 %298
  %v301 = vmul.f32 %v281, %v287
  %v302 = vmul.f32 %v282, %v291
  %v303 = vmul.f32 %v283, %v295
  %v304 = vmul.f32 %v284, %v299
  %v305 = vadd.f32 %v301, %v302
  %v306 = vadd.f32 %v305, %v303
  %v307 = vadd.f32 %v306, %v304
  %v308 = vrot.slane %v307, 4
  %v309 = vadd.f32 %v307, %v308
  %v310 = vrot.slane %v309, 2
  %v311 = vadd.f32 %v309, %v310
  %v312 = vrot.slane %v311, 1
  %v313 = vadd.f32 %v311, %v312
  %314 = vset.pattern.permute.xlu0 6
  %315 = vperm.xlu0 %314, %v15
  %v316 = vpop.permute.xlu0 %315
  %v318 = vadd.f32 %v313, %v316
  %319 = vst [vmem:[%s3] sm:$0x1] %v318
  // Predicated region
  $region14: #{denoiser_forward.1} parent=0 // pred_check
    _
  $region15: #{denoiser_forward.1} parent=0 // pred_check_branch
    %321 = sbr.rel (0) target = $region17
  $region16: #{denoiser_forward.1} parent=0 // pred_region
    _
  $region17: #{denoiser_forward.1} parent=0 // pred_fallthru
    _
  // Predicated region
  $region18: #{denoiser_forward.1} parent=0 // pred_check
    _
  $region19: #{denoiser_forward.1} parent=0 // pred_check_branch
    %323 = sbr.rel (0) target = $region21
  $region20: #{denoiser_forward.1} parent=0 // pred_region
    _
  $region21: #{denoiser_forward.1} parent=0 // pred_fallthru
    _

</llo_original>
